<compile_context>
chip_gen: v7x
topology: tpu7x:2x2x1
jax: 0.10.0
libtpu: 0.0.40
codegen_flags: <defaults>
</compile_context>

<pallas_src>
import jax
import jax.numpy as jnp
from jax.experimental import pallas as pl
from jax.experimental.pallas import tpu as pltpu

BN_EPS = 1e-3


def _stats_kernel(f1_ref, f2_ref, wt_ref, wb_ref, sum_ref, sq_ref):
    """Pass 1: accumulate per-channel sum / sum-of-squares of the conv output."""
    @pl.when((pl.program_id(0) == 0) & (pl.program_id(1) == 0))
    def _init():
        sum_ref[...] = jnp.zeros_like(sum_ref)
        sq_ref[...] = jnp.zeros_like(sq_ref)

    # Fused 1x1 conv for BOTH branches, no concat:
    #   (2C, C) @ (C, T)  +  (2C, C) @ (C, T)  ->  (2C, T)
    o = jnp.dot(wt_ref[...], f1_ref[0], preferred_element_type=jnp.float32)
    o = o + jnp.dot(wb_ref[...], f2_ref[0], preferred_element_type=jnp.float32)

    sum_ref[...] += jnp.sum(o, axis=-1, keepdims=True)       # (2C, 1)
    sq_ref[...] += jnp.sum(o * o, axis=-1, keepdims=True)    # (2C, 1)


def _apply_kernel(f1_ref, f2_ref, wt_ref, wb_ref, scale_ref, shift_ref,
                  o1_ref, o2_ref):
    """Pass 2: recompute conv, apply folded BN (one FMA) + ReLU, write branches."""
    o = jnp.dot(wt_ref[...], f1_ref[0], preferred_element_type=jnp.float32)
    o = o + jnp.dot(wb_ref[...], f2_ref[0], preferred_element_type=jnp.float32)
    y = jnp.maximum(o * scale_ref[...] + shift_ref[...], 0.0)   # (2C, T)
    c = o1_ref.shape[1]
    o1_ref[0] = y[:c].astype(o1_ref.dtype)
    o2_ref[0] = y[c:].astype(o2_ref.dtype)


def _pick_spatial_tile(hw, c):
    """Largest spatial tile that divides HW, is a multiple of 128 (lane width),
    and keeps the streaming working set comfortably inside scoped VMEM."""
    if hw % 128 != 0:
        return hw  # full spatial extent: always a legal block shape
    # ~10 live (C, T) f32 tiles (2 ins + 2 outs double-buffered + temps).
    budget_bytes = 8 * 1024 * 1024
    t = budget_bytes // (max(c, 1) * 4 * 10)
    t = min(hw, 2048, (t // 128) * 128)
    t = max(t, 128)
    while hw % t != 0:
        t -= 128
    return t


def nddr_forward(feature1, feature2, w1, w2, gamma1, beta1, gamma2, beta2,
                 tile_hw=None):
    """feature1, feature2: NCHW float32.
    w1, w2: (C, 2C) -- the PyTorch conv weights with the trailing 1x1 squeezed.
    gamma*/beta*: (C,) BatchNorm affine parameters."""
    N, C, H, W = feature1.shape
    HW = H * W
    M = N * HW
    dtype = feature1.dtype

    # NCHW -> (N, C, HW): pure reshape, no data movement.
    f1 = feature1.reshape(N, C, HW)
    f2 = feature2.reshape(N, C, HW)

    # Split each (C, 2C) weight into its f1/f2 halves and stack the two
    # branches row-wise, so one matmul produces both branch outputs (2C, T).
    w_top = jnp.concatenate([w1[:, :C], w2[:, :C]], axis=0)  # (2C, C) applied to f1
    w_bot = jnp.concatenate([w1[:, C:], w2[:, C:]], axis=0)  # (2C, C) applied to f2

    if tile_hw is None:
        tile_hw = _pick_spatial_tile(HW, C)
    assert HW % tile_hw == 0, "spatial tile must divide H*W"
    grid = (N, HW // tile_hw)

    feat_spec = pl.BlockSpec((1, C, tile_hw), lambda n, t: (n, 0, t))
    w_spec = pl.BlockSpec((2 * C, C), lambda n, t: (0, 0))     # resident across grid
    vec_spec = pl.BlockSpec((2 * C, 1), lambda n, t: (0, 0))   # resident across grid

    # ---- Pass 1: streaming per-channel statistics -------------------------
    ch_sum, ch_sq = pl.pallas_call(
        _stats_kernel,
        out_shape=(jax.ShapeDtypeStruct((2 * C, 1), jnp.float32),
                   jax.ShapeDtypeStruct((2 * C, 1), jnp.float32)),
        grid=grid,
        in_specs=[feat_spec, feat_spec, w_spec, w_spec],
        out_specs=(vec_spec, vec_spec),
        compiler_params=pltpu.CompilerParams(
            dimension_semantics=("arbitrary", "arbitrary")),
    )(f1, f2, w_top, w_bot)

    # Fold training-mode BN into a single per-channel FMA (tiny (2C,) math).
    mean = ch_sum[:, 0] / M
    var = ch_sq[:, 0] / M - mean * mean                 # biased variance
    g = jnp.concatenate([gamma1, gamma2]).astype(jnp.float32)
    b = jnp.concatenate([beta1, beta2]).astype(jnp.float32)
    rinv = jax.lax.rsqrt(var + BN_EPS)
    scale = (g * rinv).reshape(2 * C, 1)
    shift = (b - mean * g * rinv).reshape(2 * C, 1)

    # ---- Pass 2: conv (recomputed) + fused BN + ReLU, fully parallel ------
    o1, o2 = pl.pallas_call(
        _apply_kernel,
        out_shape=(jax.ShapeDtypeStruct((N, C, HW), dtype),
                   jax.ShapeDtypeStruct((N, C, HW), dtype)),
        grid=grid,
        in_specs=[feat_spec, feat_spec, w_spec, w_spec, vec_spec, vec_spec],
        out_specs=(feat_spec, feat_spec),
        compiler_params=pltpu.CompilerParams(
            dimension_semantics=("parallel", "parallel")),
    )(f1, f2, w_top, w_bot, scale, shift)

    return o1.reshape(N, C, H, W), o2.reshape(N, C, H, W)


def _reference(feature1, feature2, w1, w2, gamma1, beta1, gamma2, beta2):
    """Pure-JAX reference mirroring the PyTorch forward (training-mode BN)."""
    x = jnp.concatenate([feature1, feature2], axis=1)  # (N, 2C, H, W)

    def branch(w, g, b):
        o = jnp.einsum('ncHW,oc->noHW', x, w)  # 1x1 conv, no bias
        mean = jnp.mean(o, axis=(0, 2, 3), keepdims=True)
        var = jnp.mean((o - mean) ** 2, axis=(0, 2, 3), keepdims=True)
        o = (o - mean) / jnp.sqrt(var + BN_EPS)
        o = o * g.reshape(1, -1, 1, 1) + b.reshape(1, -1, 1, 1)
        return jnp.maximum(o, 0.0)

    return branch(w1, gamma1, beta1), branch(w2, gamma2, beta2)


if __name__ == "__main__":
    fwd = jax.jit(nddr_forward, static_argnames=("tile_hw",))

    # ---- Test 1: module defaults ('constant' init), N=2, C=8, 16x16 -------
    N, C, H, W = 2, 8, 16, 16
    init_weights = [0.9, 0.1]

    key = jax.random.PRNGKey(0)
    k1, k2, k3, k4, k5, k6, k7, k8 = jax.random.split(key, 8)
    feature1 = jax.random.normal(k1, (N, C, H, W), dtype=jnp.float32)
    feature2 = jax.random.normal(k2, (N, C, H, W), dtype=jnp.float32)

    eye = jnp.eye(C, dtype=jnp.float32)
    w1 = jnp.concatenate([eye * init_weights[0], eye * init_weights[1]], axis=1)  # (C, 2C)
    w2 = jnp.concatenate([eye * init_weights[1], eye * init_weights[0]], axis=1)  # (C, 2C)
    gamma1 = jnp.ones((C,), jnp.float32)
    beta1 = jnp.zeros((C,), jnp.float32)
    gamma2 = jnp.ones((C,), jnp.float32)
    beta2 = jnp.zeros((C,), jnp.float32)

    out1, out2 = fwd(feature1, feature2, w1, w2, gamma1, beta1, gamma2, beta2)
    jax.block_until_ready((out1, out2))

    ref1, ref2 = _reference(feature1, feature2, w1, w2, gamma1, beta1, gamma2, beta2)
    assert out1.shape == (N, C, H, W) and out2.shape == (N, C, H, W)
    assert jnp.allclose(out1, ref1, atol=1e-4, rtol=1e-4)
    assert jnp.allclose(out2, ref2, atol=1e-4, rtol=1e-4)

    # ---- Test 2: random weights/affine, forced multi-tile streaming grid --
    f1b = jax.random.normal(k3, (1, C, H, W), dtype=jnp.float32)
    f2b = jax.random.normal(k4, (1, C, H, W), dtype=jnp.float32)
    w1b = 0.1 * jax.random.normal(k5, (C, 2 * C), dtype=jnp.float32)
    w2b = 0.1 * jax.random.normal(k6, (C, 2 * C), dtype=jnp.float32)
    g1b = 1.0 + 0.1 * jax.random.normal(k7, (C,), dtype=jnp.float32)
    b1b = 0.1 * jax.random.normal(k8, (C,), dtype=jnp.float32)
    g2b = g1b[::-1]
    b2b = b1b[::-1]

    o1b, o2b = fwd(f1b, f2b, w1b, w2b, g1b, b1b, g2b, b2b, tile_hw=128)
    jax.block_until_ready((o1b, o2b))
    r1b, r2b = _reference(f1b, f2b, w1b, w2b, g1b, b1b, g2b, b2b)
    assert jnp.allclose(o1b, r1b, atol=1e-4, rtol=1e-4)
    assert jnp.allclose(o2b, r2b, atol=1e-4, rtol=1e-4)

    print("KERNEL_OK")
</pallas_src>

<mosaic_0001>
module attributes {stable_mosaic.version = 11 : i64} {
  func.func @_stats_kernel(%arg0: i32, %arg1: i32, %arg2: memref<1x8x256xf32, #tpu.memory_space<vmem>>, %arg3: memref<1x8x256xf32, #tpu.memory_space<vmem>>, %arg4: memref<16x8xf32, #tpu.memory_space<vmem>>, %arg5: memref<16x8xf32, #tpu.memory_space<vmem>>, %arg6: memref<16x1xf32, #tpu.memory_space<vmem>>, %arg7: memref<16x1xf32, #tpu.memory_space<vmem>>) attributes {dimension_semantics = [#tpu.dimension_semantics<arbitrary>, #tpu.dimension_semantics<arbitrary>], iteration_bounds = array<i64: 2, 1>, scalar_prefetch = 0 : i64, scratch_operands = 0 : i64, tpu.core_type = #tpu.core_type<tc>, window_params = [{transform_indices = @transform_0, window_bounds = array<i64: 1, 8, 256>}, {transform_indices = @transform_1, window_bounds = array<i64: 1, 8, 256>}, {pipeline_mode = #tpu.pipeline_mode<synchronous>, transform_indices = @transform_2, window_bounds = array<i64: 16, 8>}, {pipeline_mode = #tpu.pipeline_mode<synchronous>, transform_indices = @transform_3, window_bounds = array<i64: 16, 8>}, {pipeline_mode = #tpu.pipeline_mode<synchronous>, transform_indices = @transform_4, window_bounds = array<i64: 16, 1>}, {pipeline_mode = #tpu.pipeline_mode<synchronous>, transform_indices = @transform_5, window_bounds = array<i64: 16, 1>}]} {
    %c0_i32 = arith.constant 0 : i32
    %0 = arith.cmpi eq, %arg0, %c0_i32 : i32
    %c0_i32_0 = arith.constant 0 : i32
    %1 = arith.cmpi eq, %arg1, %c0_i32_0 : i32
    %2 = arith.andi %0, %1 : i1
    %3 = arith.extui %2 : i1 to i32
    %c0_i32_1 = arith.constant 0 : i32
    %4 = arith.cmpi ne, %3, %c0_i32_1 : i32
    scf.if %4 {
      %cst_22 = arith.constant 0.000000e+00 : f32
      %25 = vector.broadcast %cst_22 : f32 to vector<16x1xf32>
      %c0_23 = arith.constant 0 : index
      %c0_24 = arith.constant 0 : index
      %26 = vector.load %arg6[%c0_23, %c0_24] : memref<16x1xf32, #tpu.memory_space<vmem>>, vector<16x1xf32>
      tpu.vector_store %arg6[%c0_23, %c0_24], %25 {strides = array<i32>} : memref<16x1xf32, #tpu.memory_space<vmem>>, vector<16x1xf32>,
      %cst_25 = arith.constant 0.000000e+00 : f32
      %27 = vector.broadcast %cst_25 : f32 to vector<16x1xf32>
      %c0_26 = arith.constant 0 : index
      %c0_27 = arith.constant 0 : index
      %28 = vector.load %arg7[%c0_26, %c0_27] : memref<16x1xf32, #tpu.memory_space<vmem>>, vector<16x1xf32>
      tpu.vector_store %arg7[%c0_26, %c0_27], %27 {strides = array<i32>} : memref<16x1xf32, #tpu.memory_space<vmem>>, vector<16x1xf32>,
    } else {
    }
    %c0 = arith.constant 0 : index
    %c0_2 = arith.constant 0 : index
    %5 = vector.load %arg4[%c0, %c0_2] : memref<16x8xf32, #tpu.memory_space<vmem>>, vector<16x8xf32>
    %c0_3 = arith.constant 0 : index
    %c0_4 = arith.constant 0 : index
    %c0_5 = arith.constant 0 : index
    %6 = vector.load %arg2[%c0_3, %c0_4, %c0_5] : memref<1x8x256xf32, #tpu.memory_space<vmem>>, vector<1x8x256xf32>
    %7 = vector.shape_cast %6 : vector<1x8x256xf32> to vector<8x256xf32>
    %cst = arith.constant dense<0.000000e+00> : vector<16x256xf32>
    %8 = tpu.matmul %5, %7, %cst {dimension_numbers = #tpu.dot_dimension_numbers<[1], [0], [0], [1], [0, 0, 1, 1], [], []>} : vector<16x8xf32>, vector<8x256xf32>, vector<16x256xf32> -> vector<16x256xf32>
    %c0_6 = arith.constant 0 : index
    %c0_7 = arith.constant 0 : index
    %9 = vector.load %arg5[%c0_6, %c0_7] : memref<16x8xf32, #tpu.memory_space<vmem>>, vector<16x8xf32>
    %c0_8 = arith.constant 0 : index
    %c0_9 = arith.constant 0 : index
    %c0_10 = arith.constant 0 : index
    %10 = vector.load %arg3[%c0_8, %c0_9, %c0_10] : memref<1x8x256xf32, #tpu.memory_space<vmem>>, vector<1x8x256xf32>
    %11 = vector.shape_cast %10 : vector<1x8x256xf32> to vector<8x256xf32>
    %cst_11 = arith.constant dense<0.000000e+00> : vector<16x256xf32>
    %12 = tpu.matmul %9, %11, %cst_11 {dimension_numbers = #tpu.dot_dimension_numbers<[1], [0], [0], [1], [0, 0, 1, 1], [], []>} : vector<16x8xf32>, vector<8x256xf32>, vector<16x256xf32> -> vector<16x256xf32>
    %13 = arith.addf %8, %12 : vector<16x256xf32>
    %c0_12 = arith.constant 0 : index
    %c0_13 = arith.constant 0 : index
    %14 = vector.load %arg6[%c0_12, %c0_13] : memref<16x1xf32, #tpu.memory_space<vmem>>, vector<16x1xf32>
    %cst_14 = arith.constant dense<0.000000e+00> : vector<16xf32>
    %15 = vector.multi_reduction <add>, %13, %cst_14 [1] : vector<16x256xf32> to vector<16xf32>
    %16 = vector.shape_cast %15 : vector<16xf32> to vector<16x1xf32>
    %17 = arith.addf %14, %16 : vector<16x1xf32>
    %c0_15 = arith.constant 0 : index
    %c0_16 = arith.constant 0 : index
    %18 = vector.load %arg6[%c0_15, %c0_16] : memref<16x1xf32, #tpu.memory_space<vmem>>, vector<16x1xf32>
    tpu.vector_store %arg6[%c0_15, %c0_16], %17 {strides = array<i32>} : memref<16x1xf32, #tpu.memory_space<vmem>>, vector<16x1xf32>,
    %c0_17 = arith.constant 0 : index
    %c0_18 = arith.constant 0 : index
    %19 = vector.load %arg7[%c0_17, %c0_18] : memref<16x1xf32, #tpu.memory_space<vmem>>, vector<16x1xf32>
    %20 = arith.mulf %13, %13 : vector<16x256xf32>
    %cst_19 = arith.constant dense<0.000000e+00> : vector<16xf32>
    %21 = vector.multi_reduction <add>, %20, %cst_19 [1] : vector<16x256xf32> to vector<16xf32>
    %22 = vector.shape_cast %21 : vector<16xf32> to vector<16x1xf32>
    %23 = arith.addf %19, %22 : vector<16x1xf32>
    %c0_20 = arith.constant 0 : index
    %c0_21 = arith.constant 0 : index
    %24 = vector.load %arg7[%c0_20, %c0_21] : memref<16x1xf32, #tpu.memory_space<vmem>>, vector<16x1xf32>
    tpu.vector_store %arg7[%c0_20, %c0_21], %23 {strides = array<i32>} : memref<16x1xf32, #tpu.memory_space<vmem>>, vector<16x1xf32>,
    return
  }
  func.func @transform_0(%arg0: i32, %arg1: i32) -> (i32, i32, i32) {
    %c0_i32 = arith.constant 0 : i32
    %c0_i32_0 = arith.constant 0 : i32
    return %arg0, %c0_i32, %arg1 : i32, i32, i32
  }
  func.func @transform_1(%arg0: i32, %arg1: i32) -> (i32, i32, i32) {
    %c0_i32 = arith.constant 0 : i32
    %c0_i32_0 = arith.constant 0 : i32
    return %arg0, %c0_i32, %arg1 : i32, i32, i32
  }
  func.func @transform_2(%arg0: i32, %arg1: i32) -> (i32, i32) {
    %c0_i32 = arith.constant 0 : i32
    %c0_i32_0 = arith.constant 0 : i32
    %c0_i32_1 = arith.constant 0 : i32
    return %c0_i32, %c0_i32_0 : i32, i32
  }
  func.func @transform_3(%arg0: i32, %arg1: i32) -> (i32, i32) {
    %c0_i32 = arith.constant 0 : i32
    %c0_i32_0 = arith.constant 0 : i32
    %c0_i32_1 = arith.constant 0 : i32
    return %c0_i32, %c0_i32_0 : i32, i32
  }
  func.func @transform_4(%arg0: i32, %arg1: i32) -> (i32, i32) {
    %c0_i32 = arith.constant 0 : i32
    %c0_i32_0 = arith.constant 0 : i32
    %c0_i32_1 = arith.constant 0 : i32
    return %c0_i32, %c0_i32_0 : i32, i32
  }
  func.func @transform_5(%arg0: i32, %arg1: i32) -> (i32, i32) {
    %c0_i32 = arith.constant 0 : i32
    %c0_i32_0 = arith.constant 0 : i32
    %c0_i32_1 = arith.constant 0 : i32
    return %c0_i32, %c0_i32_0 : i32, i32
  }
}

module attributes {stable_mosaic.version = 11 : i64} {
  func.func @_apply_kernel(%arg0: i32, %arg1: i32, %arg2: memref<1x8x256xf32, #tpu.memory_space<vmem>>, %arg3: memref<1x8x256xf32, #tpu.memory_space<vmem>>, %arg4: memref<16x8xf32, #tpu.memory_space<vmem>>, %arg5: memref<16x8xf32, #tpu.memory_space<vmem>>, %arg6: memref<16x1xf32, #tpu.memory_space<vmem>>, %arg7: memref<16x1xf32, #tpu.memory_space<vmem>>, %arg8: memref<1x8x256xf32, #tpu.memory_space<vmem>>, %arg9: memref<1x8x256xf32, #tpu.memory_space<vmem>>) attributes {dimension_semantics = [#tpu.dimension_semantics<parallel>, #tpu.dimension_semantics<parallel>], iteration_bounds = array<i64: 2, 1>, scalar_prefetch = 0 : i64, scratch_operands = 0 : i64, tpu.core_type = #tpu.core_type<tc>, window_params = [{transform_indices = @transform_0, window_bounds = array<i64: 1, 8, 256>}, {transform_indices = @transform_1, window_bounds = array<i64: 1, 8, 256>}, {pipeline_mode = #tpu.pipeline_mode<synchronous>, transform_indices = @transform_2, window_bounds = array<i64: 16, 8>}, {pipeline_mode = #tpu.pipeline_mode<synchronous>, transform_indices = @transform_3, window_bounds = array<i64: 16, 8>}, {pipeline_mode = #tpu.pipeline_mode<synchronous>, transform_indices = @transform_4, window_bounds = array<i64: 16, 1>}, {pipeline_mode = #tpu.pipeline_mode<synchronous>, transform_indices = @transform_5, window_bounds = array<i64: 16, 1>}, {transform_indices = @transform_6, window_bounds = array<i64: 1, 8, 256>}, {transform_indices = @transform_7, window_bounds = array<i64: 1, 8, 256>}]} {
    %c0 = arith.constant 0 : index
    %c0_0 = arith.constant 0 : index
    %0 = vector.load %arg4[%c0, %c0_0] : memref<16x8xf32, #tpu.memory_space<vmem>>, vector<16x8xf32>
    %c0_1 = arith.constant 0 : index
    %c0_2 = arith.constant 0 : index
    %c0_3 = arith.constant 0 : index
    %1 = vector.load %arg2[%c0_1, %c0_2, %c0_3] : memref<1x8x256xf32, #tpu.memory_space<vmem>>, vector<1x8x256xf32>
    %2 = vector.shape_cast %1 : vector<1x8x256xf32> to vector<8x256xf32>
    %cst = arith.constant dense<0.000000e+00> : vector<16x256xf32>
    %3 = tpu.matmul %0, %2, %cst {dimension_numbers = #tpu.dot_dimension_numbers<[1], [0], [0], [1], [0, 0, 1, 1], [], []>} : vector<16x8xf32>, vector<8x256xf32>, vector<16x256xf32> -> vector<16x256xf32>
    %c0_4 = arith.constant 0 : index
    %c0_5 = arith.constant 0 : index
    %4 = vector.load %arg5[%c0_4, %c0_5] : memref<16x8xf32, #tpu.memory_space<vmem>>, vector<16x8xf32>
    %c0_6 = arith.constant 0 : index
    %c0_7 = arith.constant 0 : index
    %c0_8 = arith.constant 0 : index
    %5 = vector.load %arg3[%c0_6, %c0_7, %c0_8] : memref<1x8x256xf32, #tpu.memory_space<vmem>>, vector<1x8x256xf32>
    %6 = vector.shape_cast %5 : vector<1x8x256xf32> to vector<8x256xf32>
    %cst_9 = arith.constant dense<0.000000e+00> : vector<16x256xf32>
    %7 = tpu.matmul %4, %6, %cst_9 {dimension_numbers = #tpu.dot_dimension_numbers<[1], [0], [0], [1], [0, 0, 1, 1], [], []>} : vector<16x8xf32>, vector<8x256xf32>, vector<16x256xf32> -> vector<16x256xf32>
    %8 = arith.addf %3, %7 : vector<16x256xf32>
    %c0_10 = arith.constant 0 : index
    %c0_11 = arith.constant 0 : index
    %9 = vector.load %arg6[%c0_10, %c0_11] : memref<16x1xf32, #tpu.memory_space<vmem>>, vector<16x1xf32>
    %10 = vector.broadcast %9 : vector<16x1xf32> to vector<16x256xf32>
    %11 = arith.mulf %8, %10 : vector<16x256xf32>
    %c0_12 = arith.constant 0 : index
    %c0_13 = arith.constant 0 : index
    %12 = vector.load %arg7[%c0_12, %c0_13] : memref<16x1xf32, #tpu.memory_space<vmem>>, vector<16x1xf32>
    %13 = vector.broadcast %12 : vector<16x1xf32> to vector<16x256xf32>
    %14 = arith.addf %11, %13 : vector<16x256xf32>
    %cst_14 = arith.constant 0.000000e+00 : f32
    %15 = vector.broadcast %cst_14 : f32 to vector<16x256xf32>
    %16 = arith.maximumf %14, %15 : vector<16x256xf32>
    %17 = vector.extract_strided_slice %16 {offsets = [0, 0], sizes = [8, 256], strides = [1, 1]} : vector<16x256xf32> to vector<8x256xf32>
    %c0_15 = arith.constant 0 : index
    %c0_16 = arith.constant 0 : index
    %c0_17 = arith.constant 0 : index
    %18 = vector.load %arg8[%c0_15, %c0_16, %c0_17] : memref<1x8x256xf32, #tpu.memory_space<vmem>>, vector<1x8x256xf32>
    %19 = vector.shape_cast %18 : vector<1x8x256xf32> to vector<8x256xf32>
    %20 = vector.shape_cast %17 : vector<8x256xf32> to vector<1x8x256xf32>
    tpu.vector_store %arg8[%c0_15, %c0_16, %c0_17], %20 {strides = array<i32>} : memref<1x8x256xf32, #tpu.memory_space<vmem>>, vector<1x8x256xf32>,
    %21 = vector.extract_strided_slice %16 {offsets = [8, 0], sizes = [8, 256], strides = [1, 1]} : vector<16x256xf32> to vector<8x256xf32>
    %c0_18 = arith.constant 0 : index
    %c0_19 = arith.constant 0 : index
    %c0_20 = arith.constant 0 : index
    %22 = vector.load %arg9[%c0_18, %c0_19, %c0_20] : memref<1x8x256xf32, #tpu.memory_space<vmem>>, vector<1x8x256xf32>
    %23 = vector.shape_cast %22 : vector<1x8x256xf32> to vector<8x256xf32>
    %24 = vector.shape_cast %21 : vector<8x256xf32> to vector<1x8x256xf32>
    tpu.vector_store %arg9[%c0_18, %c0_19, %c0_20], %24 {strides = array<i32>} : memref<1x8x256xf32, #tpu.memory_space<vmem>>, vector<1x8x256xf32>,
    return
  }
  func.func @transform_0(%arg0: i32, %arg1: i32) -> (i32, i32, i32) {
    %c0_i32 = arith.constant 0 : i32
    %c0_i32_0 = arith.constant 0 : i32
    return %arg0, %c0_i32, %arg1 : i32, i32, i32
  }
  func.func @transform_1(%arg0: i32, %arg1: i32) -> (i32, i32, i32) {
    %c0_i32 = arith.constant 0 : i32
    %c0_i32_0 = arith.constant 0 : i32
    return %arg0, %c0_i32, %arg1 : i32, i32, i32
  }
  func.func @transform_2(%arg0: i32, %arg1: i32) -> (i32, i32) {
    %c0_i32 = arith.constant 0 : i32
    %c0_i32_0 = arith.constant 0 : i32
    %c0_i32_1 = arith.constant 0 : i32
    return %c0_i32, %c0_i32_0 : i32, i32
  }
  func.func @transform_3(%arg0: i32, %arg1: i32) -> (i32, i32) {
    %c0_i32 = arith.constant 0 : i32
    %c0_i32_0 = arith.constant 0 : i32
    %c0_i32_1 = arith.constant 0 : i32
    return %c0_i32, %c0_i32_0 : i32, i32
  }
  func.func @transform_4(%arg0: i32, %arg1: i32) -> (i32, i32) {
    %c0_i32 = arith.constant 0 : i32
    %c0_i32_0 = arith.constant 0 : i32
    %c0_i32_1 = arith.constant 0 : i32
    return %c0_i32, %c0_i32_0 : i32, i32
  }
  func.func @transform_5(%arg0: i32, %arg1: i32) -> (i32, i32) {
    %c0_i32 = arith.constant 0 : i32
    %c0_i32_0 = arith.constant 0 : i32
    %c0_i32_1 = arith.constant 0 : i32
    return %c0_i32, %c0_i32_0 : i32, i32
  }
  func.func @transform_6(%arg0: i32, %arg1: i32) -> (i32, i32, i32) {
    %c0_i32 = arith.constant 0 : i32
    %c0_i32_0 = arith.constant 0 : i32
    return %arg0, %c0_i32, %arg1 : i32, i32, i32
  }
  func.func @transform_7(%arg0: i32, %arg1: i32) -> (i32, i32, i32) {
    %c0_i32 = arith.constant 0 : i32
    %c0_i32_0 = arith.constant 0 : i32
    return %arg0, %c0_i32, %arg1 : i32, i32, i32
  }
}

</mosaic_0001>

<llo_original>
// kernel: nddr_forward.2
$region0: #{nddr_forward.2}
  #allocation0 [shape = 'u32[]', space=smem, size = 0x4, offset = 0x4, fixed_abs, tag = 'smem constant byte address 0x4 - core index']
  #allocation1 [shape = 'u32[144,128]{1,0:T(1,128)}', space=vmem, size = 0x12000, scoped, tag = 'internal scratch']
  %s0 = inlined_call_operand.vmem [shape: f32[2,8,256], index: 0, kind: input, shape index: {}]
  %s1 = inlined_call_operand.vmem [shape: f32[2,8,256], index: 1, kind: input, shape index: {}]
  %s2 = inlined_call_operand.vmem [shape: f32[16,8], index: 2, kind: input, shape index: {}]
  %s3 = inlined_call_operand.vmem [shape: f32[16,8], index: 3, kind: input, shape index: {}]
  %s4 = inlined_call_operand.vmem [shape: f32[16,1], index: 4, kind: output, shape index: {0}]
  %s5 = inlined_call_operand.vmem [shape: f32[16,1], index: 5, kind: output, shape index: {1}]
  %6 = xla_tuple %s4, %s5
  %s7 = sld [smem:[#allocation0]]
  $region61: #{nddr_forward.2} parent=0
    _
  %s9 = ssub.s32 1, %s7
  %s10 = scalar_select 0, %s9, %s7
  loop: start=0, step=1, limit=4
  $region2: #{nddr_forward.2} parent=0 // loop_pre_header
    _
  $region3: #{nddr_forward.2} parent=0 // loop_header
    %s12 = sphi 0, %s16
    %p13 = scmp.ge.s32.totalorder %s12, 4
    %s19 = sphi 0, %s31
    %s20 = sphi 0, %s27
    %s21 = sphi 0, %s19
    %s22 = sphi 0, %s20
    %s23 = sphi 0, %s21
    %s24 = sphi 0, %s22
    %s36 = sphi 0, %s38
    %s39 = sphi 0, %s36
    %s40 = sphi 0, %s39
    %s56 = sphi 0, %s40
    %s64 = sphi 0, %s66
    %s67 = sphi 0, %s64
    %s68 = sphi 0, %s67
    %s84 = sphi 0, %s68
    %s88 = sphi 0, %s88
    %s90 = sphi 0, %s88
    %s91 = sphi 0, %s90
    %s105 = sphi 0, %s91
    %s109 = sphi 0, %s109
    %s111 = sphi 0, %s109
    %s112 = sphi 0, %s111
    %s126 = sphi 0, %s112
    %s130 = sphi 0, %s130
    %s132 = sphi 0, %s130
    %s133 = sphi 0, %s132
    %s147 = sphi 0, %s133
    %s151 = sphi 0, %s151
    %s153 = sphi 0, %s151
    %s154 = sphi 0, %s153
    %s168 = sphi 0, %s154
  $region4: #{nddr_forward.2} parent=0 // loop_header_branch
    %15 = sbr.rel (%p13) target = $region8
  $region5: #{nddr_forward.2} parent=0 // loop_body
    %s17 = ssub.s32 %s12, 1
    %s18 = ssub.s32 %s12, 2
    %s25 = sadd.s32 1, %s20
    %p26 = scmp.ge.s32.totalorder %s25, 1
    %s27 = scalar_select %p26, 0, %s25
    %s28 = sadd.s32 1, %s19
    %s29 = scalar_select %p26, %s28, %s19
    %p30 = scmp.ge.s32.totalorder %s29, 2
    %s31 = scalar_select %p30, 0, %s29
    %s32 = ssub.s32 %s19, %s31
    %s33 = ssub.s32 %s20, %s27
    %s34 = sor.u32 %s32, %s33
    %p35 = scmp.eq.s32.totalorder %s34, 0
    %s37 = sadd.s32 %s36, 1
    %s38 = scalar_select %p35, %s36, %s37
    %p41 = pneg %p35
    %p42 = scmp.eq.s32.totalorder %s12, 1
    %p43 = por %p41, %p42
    %p44 = scmp.ne.s32.totalorder %s36, %s39
    %p45 = scmp.eq.s32.totalorder %s12, 0
    %p46 = por %p44, %p45
    %p47 = scmp.ne.s32.totalorder %s36, %s39
    %p48 = scmp.eq.s32.totalorder %s17, 1
    %p49 = por %p47, %p48
    %p50 = scmp.ne.s32.totalorder %s39, %s40
    %p51 = scmp.eq.s32.totalorder %s17, 0
    %p52 = por %p50, %p51
    %p53 = scmp.ne.s32.totalorder %s39, %s40
    %p54 = scmp.eq.s32.totalorder %s18, 1
    %p55 = por %p53, %p54
    %p57 = scmp.ne.s32.totalorder %s40, %s56
    %p58 = scmp.eq.s32.totalorder %s18, 0
    %p59 = por %p57, %p58
    %s60 = ssub.s32 %s19, %s31
    %s61 = ssub.s32 %s20, %s27
    %s62 = sor.u32 %s60, %s61
    %p63 = scmp.eq.s32.totalorder %s62, 0
    %s65 = sadd.s32 %s64, 1
    %s66 = scalar_select %p63, %s64, %s65
    %p69 = pneg %p63
    %p70 = scmp.eq.s32.totalorder %s12, 1
    %p71 = por %p69, %p70
    %p72 = scmp.ne.s32.totalorder %s64, %s67
    %p73 = scmp.eq.s32.totalorder %s12, 0
    %p74 = por %p72, %p73
    %p75 = scmp.ne.s32.totalorder %s64, %s67
    %p76 = scmp.eq.s32.totalorder %s17, 1
    %p77 = por %p75, %p76
    %p78 = scmp.ne.s32.totalorder %s67, %s68
    %p79 = scmp.eq.s32.totalorder %s17, 0
    %p80 = por %p78, %p79
    %p81 = scmp.ne.s32.totalorder %s67, %s68
    %p82 = scmp.eq.s32.totalorder %s18, 1
    %p83 = por %p81, %p82
    %p85 = scmp.ne.s32.totalorder %s68, %s84
    %p86 = scmp.eq.s32.totalorder %s18, 0
    %p87 = por %p85, %p86
    %s89 = sadd.s32 %s88, 1
    %p92 = scmp.eq.s32.totalorder %s12, 1
    %p93 = scmp.ne.s32.totalorder %s88, %s90
    %p94 = scmp.eq.s32.totalorder %s12, 0
    %p95 = por %p93, %p94
    %p96 = scmp.ne.s32.totalorder %s88, %s90
    %p97 = scmp.eq.s32.totalorder %s17, 1
    %p98 = por %p96, %p97
    %p99 = scmp.ne.s32.totalorder %s90, %s91
    %p100 = scmp.eq.s32.totalorder %s17, 0
    %p101 = por %p99, %p100
    %p102 = scmp.ne.s32.totalorder %s90, %s91
    %p103 = scmp.eq.s32.totalorder %s18, 1
    %p104 = por %p102, %p103
    %p106 = scmp.ne.s32.totalorder %s91, %s105
    %p107 = scmp.eq.s32.totalorder %s18, 0
    %p108 = por %p106, %p107
    %s110 = sadd.s32 %s109, 1
    %p113 = scmp.eq.s32.totalorder %s12, 1
    %p114 = scmp.ne.s32.totalorder %s109, %s111
    %p115 = scmp.eq.s32.totalorder %s12, 0
    %p116 = por %p114, %p115
    %p117 = scmp.ne.s32.totalorder %s109, %s111
    %p118 = scmp.eq.s32.totalorder %s17, 1
    %p119 = por %p117, %p118
    %p120 = scmp.ne.s32.totalorder %s111, %s112
    %p121 = scmp.eq.s32.totalorder %s17, 0
    %p122 = por %p120, %p121
    %p123 = scmp.ne.s32.totalorder %s111, %s112
    %p124 = scmp.eq.s32.totalorder %s18, 1
    %p125 = por %p123, %p124
    %p127 = scmp.ne.s32.totalorder %s112, %s126
    %p128 = scmp.eq.s32.totalorder %s18, 0
    %p129 = por %p127, %p128
    %s131 = sadd.s32 %s130, 1
    %p134 = scmp.eq.s32.totalorder %s12, 1
    %p135 = scmp.ne.s32.totalorder %s130, %s132
    %p136 = scmp.eq.s32.totalorder %s12, 0
    %p137 = por %p135, %p136
    %p138 = scmp.ne.s32.totalorder %s130, %s132
    %p139 = scmp.eq.s32.totalorder %s17, 1
    %p140 = por %p138, %p139
    %p141 = scmp.ne.s32.totalorder %s132, %s133
    %p142 = scmp.eq.s32.totalorder %s17, 0
    %p143 = por %p141, %p142
    %p144 = scmp.ne.s32.totalorder %s132, %s133
    %p145 = scmp.eq.s32.totalorder %s18, 1
    %p146 = por %p144, %p145
    %p148 = scmp.ne.s32.totalorder %s133, %s147
    %p149 = scmp.eq.s32.totalorder %s18, 0
    %p150 = por %p148, %p149
    %s152 = sadd.s32 %s151, 1
    %p155 = scmp.eq.s32.totalorder %s12, 1
    %p156 = scmp.ne.s32.totalorder %s151, %s153
    %p157 = scmp.eq.s32.totalorder %s12, 0
    %p158 = por %p156, %p157
    %p159 = scmp.ne.s32.totalorder %s151, %s153
    %p160 = scmp.eq.s32.totalorder %s17, 1
    %p161 = por %p159, %p160
    %p162 = scmp.ne.s32.totalorder %s153, %s154
    %p163 = scmp.eq.s32.totalorder %s17, 0
    %p164 = por %p162, %p163
    %p165 = scmp.ne.s32.totalorder %s153, %s154
    %p166 = scmp.eq.s32.totalorder %s18, 1
    %p167 = por %p165, %p166
    %p169 = scmp.ne.s32.totalorder %s154, %s168
    %p170 = scmp.eq.s32.totalorder %s18, 0
    %p171 = por %p169, %p170
    %p172 = scmp.le.s32.totalorder 1, %s12
    %p173 = scmp.lt.s32.totalorder %s12, 3
    %p174 = pnand %p172, %p173
    %p175 = pneg %p174
    // Predicated region
    $region9: #{nddr_forward.2} parent=5 // pred_check
      _
    $region10: #{nddr_forward.2} parent=5 // pred_check_branch
      %177 = sbr.rel (%p174) target = $region12
    $region11: #{nddr_forward.2} parent=5 // pred_region
      %s178 = ssub.s32 %s12, 1
      // Predicated region
      $region13: #{nddr_forward.2} parent=11 // pred_check
        %p179 = pneg %p101
      $region14: #{nddr_forward.2} parent=11 // pred_check_branch
        %181 = sbr.rel (%p179) target = $region16
      $region15: #{nddr_forward.2} parent=11 // pred_region
        _
      $region16: #{nddr_forward.2} parent=11 // pred_fallthru
        _
      // Predicated region
      $region17: #{nddr_forward.2} parent=11 // pred_check
        %p182 = pneg %p122
      $region18: #{nddr_forward.2} parent=11 // pred_check_branch
        %184 = sbr.rel (%p182) target = $region20
      $region19: #{nddr_forward.2} parent=11 // pred_region
        _
      $region20: #{nddr_forward.2} parent=11 // pred_fallthru
        _
    $region12: #{nddr_forward.2} parent=5 // pred_fallthru
      _
    %p185 = scmp.lt.s32.totalorder %s12, 2
    // Predicated region
    $region21: #{nddr_forward.2} parent=5 // pred_check
      %p186 = pneg %p185
    $region22: #{nddr_forward.2} parent=5 // pred_check_branch
      %188 = sbr.rel (%p186) target = $region24
    $region23: #{nddr_forward.2} parent=5 // pred_region
      // Predicated region
      $region25: #{nddr_forward.2} parent=23 // pred_check
        %p189 = pneg %p46
      $region26: #{nddr_forward.2} parent=23 // pred_check_branch
        %191 = sbr.rel (%p189) target = $region28
      $region27: #{nddr_forward.2} parent=23 // pred_region
        %s192 = smul.u32 2, %s20
        %p193 = scmp.lt.s32.totalorder %s19, 1
        %s194 = scalar_select %p193, %s19, 1
        %p195 = scmp.lt.s32.totalorder %s192, 1
        %s196 = scalar_select %p195, %s192, 1
        %s197 = smul.addr %s194, 2
        %s198 = sadd.s32 %s196, %s197
        %s199 = smul.addr %s198, 8
        %s200 = scalar_lea.vmem %s0, %s199
        %s201 = smul.u32 2, %s20
      $region28: #{nddr_forward.2} parent=23 // pred_fallthru
        _
      // Predicated region
      $region29: #{nddr_forward.2} parent=23 // pred_check
        %p202 = pneg %p74
      $region30: #{nddr_forward.2} parent=23 // pred_check_branch
        %204 = sbr.rel (%p202) target = $region32
      $region31: #{nddr_forward.2} parent=23 // pred_region
        %s205 = smul.u32 2, %s20
        %p206 = scmp.lt.s32.totalorder %s19, 1
        %s207 = scalar_select %p206, %s19, 1
        %p208 = scmp.lt.s32.totalorder %s205, 1
        %s209 = scalar_select %p208, %s205, 1
        %s210 = smul.addr %s207, 2
        %s211 = sadd.s32 %s209, %s210
        %s212 = smul.addr %s211, 8
        %s213 = scalar_lea.vmem %s1, %s212
        %s214 = smul.u32 2, %s20
      $region32: #{nddr_forward.2} parent=23 // pred_fallthru
        _
    $region24: #{nddr_forward.2} parent=5 // pred_fallthru
      _
    %p215 = scmp.le.s32.totalorder 1, %s12
    %p216 = scmp.lt.s32.totalorder %s12, 3
    %p217 = pnand %p215, %p216
    %p218 = pneg %p217
    // Predicated region
    $region33: #{nddr_forward.2} parent=5 // pred_check
      _
    $region34: #{nddr_forward.2} parent=5 // pred_check_branch
      %220 = sbr.rel (%p217) target = $region36
    $region35: #{nddr_forward.2} parent=5 // pred_region
      %s221 = ssub.s32 %s12, 1
      %s222 = smul.u32 2, %s22
      %p223 = scmp.lt.s32.totalorder %s21, 1
      %s224 = scalar_select %p223, %s21, 1
      %p225 = scmp.lt.s32.totalorder %s222, 1
      %s226 = scalar_select %p225, %s222, 1
      %s227 = smul.addr %s224, 2
      %s228 = sadd.s32 %s226, %s227
      %s229 = smul.addr %s228, 8
      %s230 = scalar_lea.vmem %s0, %s229
      %p231 = pneg %p52
      %p232 = pneg %p49
      %s233 = smul.u32 2, %s22
      %p234 = scmp.lt.s32.totalorder %s21, 1
      %s235 = scalar_select %p234, %s21, 1
      %p236 = scmp.lt.s32.totalorder %s233, 1
      %s237 = scalar_select %p236, %s233, 1
      %s238 = smul.addr %s235, 2
      %s239 = sadd.s32 %s237, %s238
      %s240 = smul.addr %s239, 8
      %s241 = scalar_lea.vmem %s1, %s240
      %p242 = pneg %p80
      %p243 = pneg %p77
      %p244 = pneg %p101
      %p245 = pneg %p98
      %p246 = pneg %p122
      %p247 = pneg %p119
      %p248 = pneg %p143
      %p249 = pneg %p140
      %p250 = pneg %p164
      %p251 = pneg %p161
      %s252 = smul.u32 2, %s22
      %p253 = scmp.lt.s32.totalorder %s21, 1
      %s254 = scalar_select %p253, %s21, 1
      %p255 = scmp.lt.s32.totalorder %s252, 1
      %s256 = scalar_select %p255, %s252, 1
      %s257 = smul.addr %s254, 2
      %s258 = sadd.s32 %s256, %s257
      %s259 = smul.addr %s258, 8
      %s260 = scalar_lea.vmem %s0, %s259
      %s261 = smul.u32 2, %s22
      %s262 = smul.u32 2, %s22
      %p263 = scmp.lt.s32.totalorder %s21, 1
      %s264 = scalar_select %p263, %s21, 1
      %p265 = scmp.lt.s32.totalorder %s262, 1
      %s266 = scalar_select %p265, %s262, 1
      %s267 = smul.addr %s264, 2
      %s268 = sadd.s32 %s266, %s267
      %s269 = smul.addr %s268, 8
      %s270 = scalar_lea.vmem %s1, %s269
      %s271 = smul.u32 2, %s22
      %p272 = scmp.eq.s32.totalorder %s21, 0
      %p273 = scmp.eq.s32.totalorder %s22, 0
      %p274 = pnand %p272, %p273
      %p275 = pneg %p274
      // Predicated region
      $region37: #{nddr_forward.2} parent=35 // pred_check
        _
      $region38: #{nddr_forward.2} parent=35 // pred_check_branch
        %277 = sbr.rel (%p274) target = $region40
      $region39: #{nddr_forward.2} parent=35 // pred_region
        %vm278 = vcmask 7168
        %279 = vst.msk [vmem:[%s4] sm:$0xff] %vm278, 0.0
        %280 = vst.msk [vmem:[%s4 + $0x8] sm:$0xff] %vm278, 0.0
        %281 = vst.msk [vmem:[%s5] sm:$0xff] %vm278, 0.0
        %282 = vst.msk [vmem:[%s5 + $0x8] sm:$0xff] %vm278, 0.0
      $region40: #{nddr_forward.2} parent=35 // pred_fallthru
        _
      %v283 = vld [vmem:[%s2] sm:$0xff]
      %v284 = vld [vmem:[%s2 + $0x8] sm:$0xff]
      %v285 = vld [vmem:[%s260] sm:$0xff]
      %v286 = vld [vmem:[%s260 + $0x8] sm:$0xff]
      %v287 = vld [vmem:[%s3] sm:$0xff]
      %v288 = vld [vmem:[%s3 + $0x8] sm:$0xff]
      %v289 = vld [vmem:[%s270] sm:$0xff]
      %v290 = vld [vmem:[%s270 + $0x8] sm:$0xff]
      %vm291 = vcmask 64512
      %v293 = vsel %vm291, %v287, 0
      %v296 = vsel %vm291, %v288, 0
      %298 = vmatprep.subr.mxu0 %v290
      %299 = vmatpush1.msra.mxu0 %v289
      %300 = vmatprep.subr.mxu0 0.0
      %301 = vmatpush1.msra.mxu0 0.0
      %302 = vmatprep.subr.mxu0 0.0
      %303 = vmatpush1.msra.mxu0 0.0
      %304 = vmatprep.subr.mxu0 0.0
      %305 = vmatpush1.msra.mxu0 0.0
      %306 = vmatprep.subr.mxu0 0.0
      %307 = vmatpush1.msra.mxu0 0.0
      %308 = vmatprep.subr.mxu0 0.0
      %309 = vmatpush1.msra.mxu0 0.0
      %310 = vmatprep.subr.mxu0 0.0
      %311 = vmatpush1.msra.mxu0 0.0
      %312 = vmatprep.subr.mxu0 0.0
      %313 = vmatpush1.msra.mxu0 0.0
      %314 = vmatprep.subr.mxu0 0.0
      %315 = vmatpush1.msra.mxu0 0.0
      %316 = vmatprep.subr.mxu0 0.0
      %317 = vmatpush1.msra.mxu0 0.0
      %318 = vmatprep.subr.mxu0 0.0
      %319 = vmatpush1.msra.mxu0 0.0
      %320 = vmatprep.subr.mxu0 0.0
      %321 = vmatpush1.msra.mxu0 0.0
      %322 = vmatprep.subr.mxu0 0.0
      %323 = vmatpush1.msra.mxu0 0.0
      %324 = vmatprep.subr.mxu0 0.0
      %325 = vmatpush1.msra.mxu0 0.0
      %326 = vmatprep.subr.mxu0 0.0
      %327 = vmatpush1.msra.mxu0 0.0
      %328 = vmatprep.subr.mxu0 0.0
      %329 = vmatpush1.msra.mxu0 0.0
      %330 = vmatprep.subr.mxu0 0.0
      %331 = vmatpush1.msra.mxu0 0.0
      %332 = vmatprep.subr.mxu0 0.0
      %333 = vmatpush1.msra.mxu0 0.0
      %334 = vmatprep.subr.mxu0 0.0
      %335 = vmatpush1.msra.mxu0 0.0
      %336 = vmatprep.subr.mxu0 0.0
      %337 = vmatpush1.msra.mxu0 0.0
      %338 = vmatprep.subr.mxu0 0.0
      %339 = vmatpush1.msra.mxu0 0.0
      %340 = vmatprep.subr.mxu0 0.0
      %341 = vmatpush1.msra.mxu0 0.0
      %342 = vmatprep.subr.mxu0 0.0
      %343 = vmatpush1.msra.mxu0 0.0
      %344 = vmatprep.subr.mxu0 0.0
      %345 = vmatpush1.msra.mxu0 0.0
      %346 = vmatprep.subr.mxu0 0.0
      %347 = vmatpush1.msra.mxu0 0.0
      %348 = vmatprep.subr.mxu0 0.0
      %349 = vmatpush1.msra.mxu0 0.0
      %350 = vmatprep.subr.mxu0 0.0
      %351 = vmatpush1.msra.mxu0 0.0
      %352 = vmatprep.subr.mxu0 0.0
      %353 = vmatpush1.msra.mxu0 0.0
      %354 = vmatprep.subr.mxu0 0.0
      %355 = vmatpush1.msra.mxu0 0.0
      %356 = vmatprep.subr.mxu0 0.0
      %357 = vmatpush1.msra.mxu0 0.0
      %358 = vmatprep.subr.mxu0 0.0
      %359 = vmatpush1.msra.mxu0 0.0
      %360 = vmatprep.subr.mxu0 0.0
      %361 = vmatpush1.msra.mxu0 0.0
      %362 = vmatprep.mubr.f32.mxu0 0.0
      %363 = vmatmul.mubr.f32.gmra.mrb[0].mxu0 %v293
      %v364 = vpop.f32.mrb[0].mxu0
      %v365 = vadd.f32 0.0, %v364
      %v366 = vpop.f32.mrb[0].mxu0
      %v367 = vadd.f32 0.0, %v366
      %368 = vmatprep.mubr.f32.mxu0 0.0
      %369 = vmatmul.mubr.f32.gmra.mrb[0].mxu0 %v296
      %v370 = vpop.f32.mrb[0].mxu0
      %v371 = vadd.f32 0.0, %v370
      %v372 = vpop.f32.mrb[0].mxu0
      %v373 = vadd.f32 0.0, %v372
      %374 = vdwg.mxu0
      %v376 = vsel %vm291, %v283, 0
      %v379 = vsel %vm291, %v284, 0
      %381 = vmatprep.subr.mxu0 %v286
      %382 = vmatpush1.msra.mxu0 %v285
      %383 = vmatprep.subr.mxu0 0.0
      %384 = vmatpush1.msra.mxu0 0.0
      %385 = vmatprep.subr.mxu0 0.0
      %386 = vmatpush1.msra.mxu0 0.0
      %387 = vmatprep.subr.mxu0 0.0
      %388 = vmatpush1.msra.mxu0 0.0
      %389 = vmatprep.subr.mxu0 0.0
      %390 = vmatpush1.msra.mxu0 0.0
      %391 = vmatprep.subr.mxu0 0.0
      %392 = vmatpush1.msra.mxu0 0.0
      %393 = vmatprep.subr.mxu0 0.0
      %394 = vmatpush1.msra.mxu0 0.0
      %395 = vmatprep.subr.mxu0 0.0
      %396 = vmatpush1.msra.mxu0 0.0
      %397 = vmatprep.subr.mxu0 0.0
      %398 = vmatpush1.msra.mxu0 0.0
      %399 = vmatprep.subr.mxu0 0.0
      %400 = vmatpush1.msra.mxu0 0.0
      %401 = vmatprep.subr.mxu0 0.0
      %402 = vmatpush1.msra.mxu0 0.0
      %403 = vmatprep.subr.mxu0 0.0
      %404 = vmatpush1.msra.mxu0 0.0
      %405 = vmatprep.subr.mxu0 0.0
      %406 = vmatpush1.msra.mxu0 0.0
      %407 = vmatprep.subr.mxu0 0.0
      %408 = vmatpush1.msra.mxu0 0.0
      %409 = vmatprep.subr.mxu0 0.0
      %410 = vmatpush1.msra.mxu0 0.0
      %411 = vmatprep.subr.mxu0 0.0
      %412 = vmatpush1.msra.mxu0 0.0
      %413 = vmatprep.subr.mxu0 0.0
      %414 = vmatpush1.msra.mxu0 0.0
      %415 = vmatprep.subr.mxu0 0.0
      %416 = vmatpush1.msra.mxu0 0.0
      %417 = vmatprep.subr.mxu0 0.0
      %418 = vmatpush1.msra.mxu0 0.0
      %419 = vmatprep.subr.mxu0 0.0
      %420 = vmatpush1.msra.mxu0 0.0
      %421 = vmatprep.subr.mxu0 0.0
      %422 = vmatpush1.msra.mxu0 0.0
      %423 = vmatprep.subr.mxu0 0.0
      %424 = vmatpush1.msra.mxu0 0.0
      %425 = vmatprep.subr.mxu0 0.0
      %426 = vmatpush1.msra.mxu0 0.0
      %427 = vmatprep.subr.mxu0 0.0
      %428 = vmatpush1.msra.mxu0 0.0
      %429 = vmatprep.subr.mxu0 0.0
      %430 = vmatpush1.msra.mxu0 0.0
      %431 = vmatprep.subr.mxu0 0.0
      %432 = vmatpush1.msra.mxu0 0.0
      %433 = vmatprep.subr.mxu0 0.0
      %434 = vmatpush1.msra.mxu0 0.0
      %435 = vmatprep.subr.mxu0 0.0
      %436 = vmatpush1.msra.mxu0 0.0
      %437 = vmatprep.subr.mxu0 0.0
      %438 = vmatpush1.msra.mxu0 0.0
      %439 = vmatprep.subr.mxu0 0.0
      %440 = vmatpush1.msra.mxu0 0.0
      %441 = vmatprep.subr.mxu0 0.0
      %442 = vmatpush1.msra.mxu0 0.0
      %443 = vmatprep.subr.mxu0 0.0
      %444 = vmatpush1.msra.mxu0 0.0
      %445 = vmatprep.mubr.f32.mxu0 0.0
      %446 = vmatmul.mubr.f32.gmra.mrb[0].mxu0 %v376
      %v447 = vpop.f32.mrb[0].mxu0
      %v448 = vadd.f32 %v365, %v447
      %v449 = vpop.f32.mrb[0].mxu0
      %v450 = vadd.f32 %v367, %v449
      %451 = vmatprep.mubr.f32.mxu0 0.0
      %452 = vmatmul.mubr.f32.gmra.mrb[0].mxu0 %v379
      %v453 = vpop.f32.mrb[0].mxu0
      %v454 = vadd.f32 %v371, %v453
      %v455 = vpop.f32.mrb[0].mxu0
      %v456 = vadd.f32 %v373, %v455
      %457 = vdwg.mxu0
      %v458 = vld [vmem:[%s4] sm:$0xff]
      %v459 = vld [vmem:[%s4 + $0x8] sm:$0xff]
      %v460 = vadd.f32 %v448, %v450
      %461 = vadd.xlane.f32.xlu0 %v460
      %v462 = vpop.xlane.xlu0 %461
      %v463 = vadd.f32 %v454, %v456
      %464 = vadd.xlane.f32.xlu0 %v463
      %v465 = vpop.xlane.xlu0 %464
      %v466 = vadd.f32 %v458, %v462
      %v467 = vadd.f32 %v459, %v465
      %vm468 = vcmask 7168
      %469 = vst.msk [vmem:[%s4] sm:$0xff] %vm468, %v466
      %470 = vst.msk [vmem:[%s4 + $0x8] sm:$0xff] %vm468, %v467
      %v471 = vld [vmem:[%s5] sm:$0xff]
      %v472 = vld [vmem:[%s5 + $0x8] sm:$0xff]
      %v473 = vmul.f32 %v448, %v448
      %v474 = vmul.f32 %v450, %v450
      %v475 = vmul.f32 %v454, %v454
      %v476 = vmul.f32 %v456, %v456
      %v477 = vadd.f32 %v473, %v474
      %478 = vadd.xlane.f32.xlu0 %v477
      %v479 = vpop.xlane.xlu0 %478
      %v480 = vadd.f32 %v475, %v476
      %481 = vadd.xlane.f32.xlu0 %v480
      %v482 = vpop.xlane.xlu0 %481
      %v483 = vadd.f32 %v471, %v479
      %v484 = vadd.f32 %v472, %v482
      %485 = vst.msk [vmem:[%s5] sm:$0xff] %vm468, %v483
      %486 = vst.msk [vmem:[%s5 + $0x8] sm:$0xff] %vm468, %v484
      // Predicated region
      $region41: #{nddr_forward.2} parent=35 // pred_check
        %p487 = pneg %p140
      $region42: #{nddr_forward.2} parent=35 // pred_check_branch
        %489 = sbr.rel (%p487) target = $region44
      $region43: #{nddr_forward.2} parent=35 // pred_region
        _
      $region44: #{nddr_forward.2} parent=35 // pred_fallthru
        _
      // Predicated region
      $region45: #{nddr_forward.2} parent=35 // pred_check
        %p490 = pneg %p161
      $region46: #{nddr_forward.2} parent=35 // pred_check_branch
        %492 = sbr.rel (%p490) target = $region48
      $region47: #{nddr_forward.2} parent=35 // pred_region
        _
      $region48: #{nddr_forward.2} parent=35 // pred_fallthru
        _
      // Predicated region
      $region49: #{nddr_forward.2} parent=35 // pred_check
        %p493 = pneg %p140
      $region50: #{nddr_forward.2} parent=35 // pred_check_branch
        %495 = sbr.rel (%p493) target = $region52
      $region51: #{nddr_forward.2} parent=35 // pred_region
        _
      $region52: #{nddr_forward.2} parent=35 // pred_fallthru
        _
      // Predicated region
      $region53: #{nddr_forward.2} parent=35 // pred_check
        %p496 = pneg %p161
      $region54: #{nddr_forward.2} parent=35 // pred_check_branch
        %498 = sbr.rel (%p496) target = $region56
      $region55: #{nddr_forward.2} parent=35 // pred_region
        _
      $region56: #{nddr_forward.2} parent=35 // pred_fallthru
        _
    $region36: #{nddr_forward.2} parent=5 // pred_fallthru
      _
    %p499 = scmp.le.s32.totalorder 2, %s12
    // Predicated region
    $region57: #{nddr_forward.2} parent=5 // pred_check
      %p500 = pneg %p499
    $region58: #{nddr_forward.2} parent=5 // pred_check_branch
      %502 = sbr.rel (%p500) target = $region60
    $region59: #{nddr_forward.2} parent=5 // pred_region
      %s503 = ssub.s32 %s12, 2
    $region60: #{nddr_forward.2} parent=5 // pred_fallthru
      _
  $region6: #{nddr_forward.2} parent=0 // loop_footer
    %s16 = sadd.s32 1, %s12
  $region7: #{nddr_forward.2} parent=0 // loop_footer_branch
    %11 = sbr.rel target = $region3
  $region8: #{nddr_forward.2} parent=0 // loop_exit
    _

// kernel: nddr_forward.3
$region0: #{nddr_forward.3}
  #allocation0 [shape = 'u32[]', space=smem, size = 0x4, offset = 0x4, fixed_abs, tag = 'smem constant byte address 0x4 - core index']
  #allocation1 [shape = 'u32[144,128]{1,0:T(1,128)}', space=vmem, size = 0x12000, scoped, tag = 'internal scratch']
  %s0 = inlined_call_operand.vmem [shape: f32[2,8,256], index: 0, kind: input, shape index: {}]
  %s1 = inlined_call_operand.vmem [shape: f32[2,8,256], index: 1, kind: input, shape index: {}]
  %s2 = inlined_call_operand.vmem [shape: f32[16,8], index: 2, kind: input, shape index: {}]
  %s3 = inlined_call_operand.vmem [shape: f32[16,8], index: 3, kind: input, shape index: {}]
  %s4 = inlined_call_operand.vmem [shape: f32[16,1], index: 4, kind: input, shape index: {}]
  %s5 = inlined_call_operand.vmem [shape: f32[16,1], index: 5, kind: input, shape index: {}]
  %s6 = inlined_call_operand.vmem [shape: f32[2,8,256], index: 6, kind: output, shape index: {0}]
  %s7 = inlined_call_operand.vmem [shape: f32[2,8,256], index: 7, kind: output, shape index: {1}]
  %8 = xla_tuple %s6, %s7
  %s9 = sld [smem:[#allocation0]]
  $region65: #{nddr_forward.3} parent=0
    _
  %s11 = ssub.s32 1, %s9
  %s12 = scalar_select 0, %s11, %s9
  loop: start=0, step=1, limit=4
  $region2: #{nddr_forward.3} parent=0 // loop_pre_header
    _
  $region3: #{nddr_forward.3} parent=0 // loop_header
    %s14 = sphi 0, %s18
    %p15 = scmp.ge.s32.totalorder %s14, 4
    %s21 = sphi 0, %s33
    %s22 = sphi 0, %s29
    %s23 = sphi 0, %s21
    %s24 = sphi 0, %s22
    %s25 = sphi 0, %s23
    %s26 = sphi 0, %s24
    %s38 = sphi 0, %s40
    %s41 = sphi 0, %s38
    %s42 = sphi 0, %s41
    %s58 = sphi 0, %s42
    %s66 = sphi 0, %s68
    %s69 = sphi 0, %s66
    %s70 = sphi 0, %s69
    %s86 = sphi 0, %s70
    %s90 = sphi 0, %s90
    %s92 = sphi 0, %s90
    %s93 = sphi 0, %s92
    %s107 = sphi 0, %s93
    %s111 = sphi 0, %s111
    %s113 = sphi 0, %s111
    %s114 = sphi 0, %s113
    %s128 = sphi 0, %s114
    %s132 = sphi 0, %s132
    %s134 = sphi 0, %s132
    %s135 = sphi 0, %s134
    %s149 = sphi 0, %s135
    %s153 = sphi 0, %s153
    %s155 = sphi 0, %s153
    %s156 = sphi 0, %s155
    %s170 = sphi 0, %s156
    %s178 = sphi 0, %s180
    %s181 = sphi 0, %s178
    %s182 = sphi 0, %s181
    %s198 = sphi 0, %s182
    %s206 = sphi 0, %s208
    %s209 = sphi 0, %s206
    %s210 = sphi 0, %s209
    %s226 = sphi 0, %s210
  $region4: #{nddr_forward.3} parent=0 // loop_header_branch
    %17 = sbr.rel (%p15) target = $region8
  $region5: #{nddr_forward.3} parent=0 // loop_body
    %s19 = ssub.s32 %s14, 1
    %s20 = ssub.s32 %s14, 2
    %s27 = sadd.s32 1, %s22
    %p28 = scmp.ge.s32.totalorder %s27, 1
    %s29 = scalar_select %p28, 0, %s27
    %s30 = sadd.s32 1, %s21
    %s31 = scalar_select %p28, %s30, %s21
    %p32 = scmp.ge.s32.totalorder %s31, 2
    %s33 = scalar_select %p32, 0, %s31
    %s34 = ssub.s32 %s21, %s33
    %s35 = ssub.s32 %s22, %s29
    %s36 = sor.u32 %s34, %s35
    %p37 = scmp.eq.s32.totalorder %s36, 0
    %s39 = sadd.s32 %s38, 1
    %s40 = scalar_select %p37, %s38, %s39
    %p43 = pneg %p37
    %p44 = scmp.eq.s32.totalorder %s14, 1
    %p45 = por %p43, %p44
    %p46 = scmp.ne.s32.totalorder %s38, %s41
    %p47 = scmp.eq.s32.totalorder %s14, 0
    %p48 = por %p46, %p47
    %p49 = scmp.ne.s32.totalorder %s38, %s41
    %p50 = scmp.eq.s32.totalorder %s19, 1
    %p51 = por %p49, %p50
    %p52 = scmp.ne.s32.totalorder %s41, %s42
    %p53 = scmp.eq.s32.totalorder %s19, 0
    %p54 = por %p52, %p53
    %p55 = scmp.ne.s32.totalorder %s41, %s42
    %p56 = scmp.eq.s32.totalorder %s20, 1
    %p57 = por %p55, %p56
    %p59 = scmp.ne.s32.totalorder %s42, %s58
    %p60 = scmp.eq.s32.totalorder %s20, 0
    %p61 = por %p59, %p60
    %s62 = ssub.s32 %s21, %s33
    %s63 = ssub.s32 %s22, %s29
    %s64 = sor.u32 %s62, %s63
    %p65 = scmp.eq.s32.totalorder %s64, 0
    %s67 = sadd.s32 %s66, 1
    %s68 = scalar_select %p65, %s66, %s67
    %p71 = pneg %p65
    %p72 = scmp.eq.s32.totalorder %s14, 1
    %p73 = por %p71, %p72
    %p74 = scmp.ne.s32.totalorder %s66, %s69
    %p75 = scmp.eq.s32.totalorder %s14, 0
    %p76 = por %p74, %p75
    %p77 = scmp.ne.s32.totalorder %s66, %s69
    %p78 = scmp.eq.s32.totalorder %s19, 1
    %p79 = por %p77, %p78
    %p80 = scmp.ne.s32.totalorder %s69, %s70
    %p81 = scmp.eq.s32.totalorder %s19, 0
    %p82 = por %p80, %p81
    %p83 = scmp.ne.s32.totalorder %s69, %s70
    %p84 = scmp.eq.s32.totalorder %s20, 1
    %p85 = por %p83, %p84
    %p87 = scmp.ne.s32.totalorder %s70, %s86
    %p88 = scmp.eq.s32.totalorder %s20, 0
    %p89 = por %p87, %p88
    %s91 = sadd.s32 %s90, 1
    %p94 = scmp.eq.s32.totalorder %s14, 1
    %p95 = scmp.ne.s32.totalorder %s90, %s92
    %p96 = scmp.eq.s32.totalorder %s14, 0
    %p97 = por %p95, %p96
    %p98 = scmp.ne.s32.totalorder %s90, %s92
    %p99 = scmp.eq.s32.totalorder %s19, 1
    %p100 = por %p98, %p99
    %p101 = scmp.ne.s32.totalorder %s92, %s93
    %p102 = scmp.eq.s32.totalorder %s19, 0
    %p103 = por %p101, %p102
    %p104 = scmp.ne.s32.totalorder %s92, %s93
    %p105 = scmp.eq.s32.totalorder %s20, 1
    %p106 = por %p104, %p105
    %p108 = scmp.ne.s32.totalorder %s93, %s107
    %p109 = scmp.eq.s32.totalorder %s20, 0
    %p110 = por %p108, %p109
    %s112 = sadd.s32 %s111, 1
    %p115 = scmp.eq.s32.totalorder %s14, 1
    %p116 = scmp.ne.s32.totalorder %s111, %s113
    %p117 = scmp.eq.s32.totalorder %s14, 0
    %p118 = por %p116, %p117
    %p119 = scmp.ne.s32.totalorder %s111, %s113
    %p120 = scmp.eq.s32.totalorder %s19, 1
    %p121 = por %p119, %p120
    %p122 = scmp.ne.s32.totalorder %s113, %s114
    %p123 = scmp.eq.s32.totalorder %s19, 0
    %p124 = por %p122, %p123
    %p125 = scmp.ne.s32.totalorder %s113, %s114
    %p126 = scmp.eq.s32.totalorder %s20, 1
    %p127 = por %p125, %p126
    %p129 = scmp.ne.s32.totalorder %s114, %s128
    %p130 = scmp.eq.s32.totalorder %s20, 0
    %p131 = por %p129, %p130
    %s133 = sadd.s32 %s132, 1
    %p136 = scmp.eq.s32.totalorder %s14, 1
    %p137 = scmp.ne.s32.totalorder %s132, %s134
    %p138 = scmp.eq.s32.totalorder %s14, 0
    %p139 = por %p137, %p138
    %p140 = scmp.ne.s32.totalorder %s132, %s134
    %p141 = scmp.eq.s32.totalorder %s19, 1
    %p142 = por %p140, %p141
    %p143 = scmp.ne.s32.totalorder %s134, %s135
    %p144 = scmp.eq.s32.totalorder %s19, 0
    %p145 = por %p143, %p144
    %p146 = scmp.ne.s32.totalorder %s134, %s135
    %p147 = scmp.eq.s32.totalorder %s20, 1
    %p148 = por %p146, %p147
    %p150 = scmp.ne.s32.totalorder %s135, %s149
    %p151 = scmp.eq.s32.totalorder %s20, 0
    %p152 = por %p150, %p151
    %s154 = sadd.s32 %s153, 1
    %p157 = scmp.eq.s32.totalorder %s14, 1
    %p158 = scmp.ne.s32.totalorder %s153, %s155
    %p159 = scmp.eq.s32.totalorder %s14, 0
    %p160 = por %p158, %p159
    %p161 = scmp.ne.s32.totalorder %s153, %s155
    %p162 = scmp.eq.s32.totalorder %s19, 1
    %p163 = por %p161, %p162
    %p164 = scmp.ne.s32.totalorder %s155, %s156
    %p165 = scmp.eq.s32.totalorder %s19, 0
    %p166 = por %p164, %p165
    %p167 = scmp.ne.s32.totalorder %s155, %s156
    %p168 = scmp.eq.s32.totalorder %s20, 1
    %p169 = por %p167, %p168
    %p171 = scmp.ne.s32.totalorder %s156, %s170
    %p172 = scmp.eq.s32.totalorder %s20, 0
    %p173 = por %p171, %p172
    %s174 = ssub.s32 %s21, %s33
    %s175 = ssub.s32 %s22, %s29
    %s176 = sor.u32 %s174, %s175
    %p177 = scmp.eq.s32.totalorder %s176, 0
    %s179 = sadd.s32 %s178, 1
    %s180 = scalar_select %p177, %s178, %s179
    %p183 = pneg %p177
    %p184 = scmp.eq.s32.totalorder %s14, 1
    %p185 = por %p183, %p184
    %p186 = scmp.ne.s32.totalorder %s178, %s181
    %p187 = scmp.eq.s32.totalorder %s14, 0
    %p188 = por %p186, %p187
    %p189 = scmp.ne.s32.totalorder %s178, %s181
    %p190 = scmp.eq.s32.totalorder %s19, 1
    %p191 = por %p189, %p190
    %p192 = scmp.ne.s32.totalorder %s181, %s182
    %p193 = scmp.eq.s32.totalorder %s19, 0
    %p194 = por %p192, %p193
    %p195 = scmp.ne.s32.totalorder %s181, %s182
    %p196 = scmp.eq.s32.totalorder %s20, 1
    %p197 = por %p195, %p196
    %p199 = scmp.ne.s32.totalorder %s182, %s198
    %p200 = scmp.eq.s32.totalorder %s20, 0
    %p201 = por %p199, %p200
    %s202 = ssub.s32 %s21, %s33
    %s203 = ssub.s32 %s22, %s29
    %s204 = sor.u32 %s202, %s203
    %p205 = scmp.eq.s32.totalorder %s204, 0
    %s207 = sadd.s32 %s206, 1
    %s208 = scalar_select %p205, %s206, %s207
    %p211 = pneg %p205
    %p212 = scmp.eq.s32.totalorder %s14, 1
    %p213 = por %p211, %p212
    %p214 = scmp.ne.s32.totalorder %s206, %s209
    %p215 = scmp.eq.s32.totalorder %s14, 0
    %p216 = por %p214, %p215
    %p217 = scmp.ne.s32.totalorder %s206, %s209
    %p218 = scmp.eq.s32.totalorder %s19, 1
    %p219 = por %p217, %p218
    %p220 = scmp.ne.s32.totalorder %s209, %s210
    %p221 = scmp.eq.s32.totalorder %s19, 0
    %p222 = por %p220, %p221
    %p223 = scmp.ne.s32.totalorder %s209, %s210
    %p224 = scmp.eq.s32.totalorder %s20, 1
    %p225 = por %p223, %p224
    %p227 = scmp.ne.s32.totalorder %s210, %s226
    %p228 = scmp.eq.s32.totalorder %s20, 0
    %p229 = por %p227, %p228
    %p230 = scmp.le.s32.totalorder 1, %s14
    %p231 = scmp.lt.s32.totalorder %s14, 3
    %p232 = pnand %p230, %p231
    %p233 = pneg %p232
    // Predicated region
    $region9: #{nddr_forward.3} parent=5 // pred_check
      _
    $region10: #{nddr_forward.3} parent=5 // pred_check_branch
      %235 = sbr.rel (%p232) target = $region12
    $region11: #{nddr_forward.3} parent=5 // pred_region
      %s236 = ssub.s32 %s14, 1
      // Predicated region
      $region13: #{nddr_forward.3} parent=11 // pred_check
        %p237 = pneg %p103
      $region14: #{nddr_forward.3} parent=11 // pred_check_branch
        %239 = sbr.rel (%p237) target = $region16
      $region15: #{nddr_forward.3} parent=11 // pred_region
        _
      $region16: #{nddr_forward.3} parent=11 // pred_fallthru
        _
      // Predicated region
      $region17: #{nddr_forward.3} parent=11 // pred_check
        %p240 = pneg %p124
      $region18: #{nddr_forward.3} parent=11 // pred_check_branch
        %242 = sbr.rel (%p240) target = $region20
      $region19: #{nddr_forward.3} parent=11 // pred_region
        _
      $region20: #{nddr_forward.3} parent=11 // pred_fallthru
        _
      // Predicated region
      $region21: #{nddr_forward.3} parent=11 // pred_check
        %p243 = pneg %p145
      $region22: #{nddr_forward.3} parent=11 // pred_check_branch
        %245 = sbr.rel (%p243) target = $region24
      $region23: #{nddr_forward.3} parent=11 // pred_region
        _
      $region24: #{nddr_forward.3} parent=11 // pred_fallthru
        _
      // Predicated region
      $region25: #{nddr_forward.3} parent=11 // pred_check
        %p246 = pneg %p166
      $region26: #{nddr_forward.3} parent=11 // pred_check_branch
        %248 = sbr.rel (%p246) target = $region28
      $region27: #{nddr_forward.3} parent=11 // pred_region
        _
      $region28: #{nddr_forward.3} parent=11 // pred_fallthru
        _
    $region12: #{nddr_forward.3} parent=5 // pred_fallthru
      _
    %p249 = scmp.lt.s32.totalorder %s14, 2
    // Predicated region
    $region29: #{nddr_forward.3} parent=5 // pred_check
      %p250 = pneg %p249
    $region30: #{nddr_forward.3} parent=5 // pred_check_branch
      %252 = sbr.rel (%p250) target = $region32
    $region31: #{nddr_forward.3} parent=5 // pred_region
      // Predicated region
      $region33: #{nddr_forward.3} parent=31 // pred_check
        %p253 = pneg %p48
      $region34: #{nddr_forward.3} parent=31 // pred_check_branch
        %255 = sbr.rel (%p253) target = $region36
      $region35: #{nddr_forward.3} parent=31 // pred_region
        %s256 = smul.u32 2, %s22
        %p257 = scmp.lt.s32.totalorder %s21, 1
        %s258 = scalar_select %p257, %s21, 1
        %p259 = scmp.lt.s32.totalorder %s256, 1
        %s260 = scalar_select %p259, %s256, 1
        %s261 = smul.addr %s258, 2
        %s262 = sadd.s32 %s260, %s261
        %s263 = smul.addr %s262, 8
        %s264 = scalar_lea.vmem %s0, %s263
        %s265 = smul.u32 2, %s22
      $region36: #{nddr_forward.3} parent=31 // pred_fallthru
        _
      // Predicated region
      $region37: #{nddr_forward.3} parent=31 // pred_check
        %p266 = pneg %p76
      $region38: #{nddr_forward.3} parent=31 // pred_check_branch
        %268 = sbr.rel (%p266) target = $region40
      $region39: #{nddr_forward.3} parent=31 // pred_region
        %s269 = smul.u32 2, %s22
        %p270 = scmp.lt.s32.totalorder %s21, 1
        %s271 = scalar_select %p270, %s21, 1
        %p272 = scmp.lt.s32.totalorder %s269, 1
        %s273 = scalar_select %p272, %s269, 1
        %s274 = smul.addr %s271, 2
        %s275 = sadd.s32 %s273, %s274
        %s276 = smul.addr %s275, 8
        %s277 = scalar_lea.vmem %s1, %s276
        %s278 = smul.u32 2, %s22
      $region40: #{nddr_forward.3} parent=31 // pred_fallthru
        _
    $region32: #{nddr_forward.3} parent=5 // pred_fallthru
      _
    %p279 = scmp.le.s32.totalorder 1, %s14
    %p280 = scmp.lt.s32.totalorder %s14, 3
    %p281 = pnand %p279, %p280
    %p282 = pneg %p281
    // Predicated region
    $region41: #{nddr_forward.3} parent=5 // pred_check
      _
    $region42: #{nddr_forward.3} parent=5 // pred_check_branch
      %284 = sbr.rel (%p281) target = $region44
    $region43: #{nddr_forward.3} parent=5 // pred_region
      %s285 = ssub.s32 %s14, 1
      %s286 = smul.u32 2, %s24
      %p287 = scmp.lt.s32.totalorder %s23, 1
      %s288 = scalar_select %p287, %s23, 1
      %p289 = scmp.lt.s32.totalorder %s286, 1
      %s290 = scalar_select %p289, %s286, 1
      %s291 = smul.addr %s288, 2
      %s292 = sadd.s32 %s290, %s291
      %s293 = smul.addr %s292, 8
      %s294 = scalar_lea.vmem %s0, %s293
      %p295 = pneg %p54
      %p296 = pneg %p51
      %s297 = smul.u32 2, %s24
      %p298 = scmp.lt.s32.totalorder %s23, 1
      %s299 = scalar_select %p298, %s23, 1
      %p300 = scmp.lt.s32.totalorder %s297, 1
      %s301 = scalar_select %p300, %s297, 1
      %s302 = smul.addr %s299, 2
      %s303 = sadd.s32 %s301, %s302
      %s304 = smul.addr %s303, 8
      %s305 = scalar_lea.vmem %s1, %s304
      %p306 = pneg %p82
      %p307 = pneg %p79
      %p308 = pneg %p103
      %p309 = pneg %p100
      %p310 = pneg %p124
      %p311 = pneg %p121
      %p312 = pneg %p145
      %p313 = pneg %p142
      %p314 = pneg %p166
      %p315 = pneg %p163
      %p316 = pneg %p194
      %p317 = pneg %p191
      %s318 = smul.u32 2, %s24
      %p319 = scmp.lt.s32.totalorder %s23, 1
      %s320 = scalar_select %p319, %s23, 1
      %p321 = scmp.lt.s32.totalorder %s318, 1
      %s322 = scalar_select %p321, %s318, 1
      %s323 = smul.addr %s320, 2
      %s324 = sadd.s32 %s322, %s323
      %s325 = smul.addr %s324, 8
      %s326 = scalar_lea.vmem %s6, %s325
      %p327 = pneg %p222
      %p328 = pneg %p219
      %s329 = smul.u32 2, %s24
      %p330 = scmp.lt.s32.totalorder %s23, 1
      %s331 = scalar_select %p330, %s23, 1
      %p332 = scmp.lt.s32.totalorder %s329, 1
      %s333 = scalar_select %p332, %s329, 1
      %s334 = smul.addr %s331, 2
      %s335 = sadd.s32 %s333, %s334
      %s336 = smul.addr %s335, 8
      %s337 = scalar_lea.vmem %s7, %s336
      %s338 = smul.u32 2, %s24
      %p339 = scmp.lt.s32.totalorder %s23, 1
      %s340 = scalar_select %p339, %s23, 1
      %p341 = scmp.lt.s32.totalorder %s338, 1
      %s342 = scalar_select %p341, %s338, 1
      %s343 = smul.addr %s340, 2
      %s344 = sadd.s32 %s342, %s343
      %s345 = smul.addr %s344, 8
      %s346 = scalar_lea.vmem %s0, %s345
      %s347 = smul.u32 2, %s24
      %s348 = smul.u32 2, %s24
      %p349 = scmp.lt.s32.totalorder %s23, 1
      %s350 = scalar_select %p349, %s23, 1
      %p351 = scmp.lt.s32.totalorder %s348, 1
      %s352 = scalar_select %p351, %s348, 1
      %s353 = smul.addr %s350, 2
      %s354 = sadd.s32 %s352, %s353
      %s355 = smul.addr %s354, 8
      %s356 = scalar_lea.vmem %s1, %s355
      %s357 = smul.u32 2, %s24
      %s358 = smul.u32 2, %s24
      %p359 = scmp.lt.s32.totalorder %s23, 1
      %s360 = scalar_select %p359, %s23, 1
      %p361 = scmp.lt.s32.totalorder %s358, 1
      %s362 = scalar_select %p361, %s358, 1
      %s363 = smul.addr %s360, 2
      %s364 = sadd.s32 %s362, %s363
      %s365 = smul.addr %s364, 8
      %s366 = scalar_lea.vmem %s6, %s365
      %s367 = smul.u32 2, %s24
      %s368 = smul.u32 2, %s24
      %p369 = scmp.lt.s32.totalorder %s23, 1
      %s370 = scalar_select %p369, %s23, 1
      %p371 = scmp.lt.s32.totalorder %s368, 1
      %s372 = scalar_select %p371, %s368, 1
      %s373 = smul.addr %s370, 2
      %s374 = sadd.s32 %s372, %s373
      %s375 = smul.addr %s374, 8
      %s376 = scalar_lea.vmem %s7, %s375
      %s377 = smul.u32 2, %s24
      %v378 = vld [vmem:[%s2] sm:$0xff]
      %v379 = vld [vmem:[%s2 + $0x8] sm:$0xff]
      %v380 = vld [vmem:[%s346] sm:$0xff]
      %v381 = vld [vmem:[%s346 + $0x8] sm:$0xff]
      %v382 = vld [vmem:[%s3] sm:$0xff]
      %v383 = vld [vmem:[%s3 + $0x8] sm:$0xff]
      %v384 = vld [vmem:[%s356] sm:$0xff]
      %v385 = vld [vmem:[%s356 + $0x8] sm:$0xff]
      %vm386 = vcmask 64512
      %v388 = vsel %vm386, %v382, 0
      %v391 = vsel %vm386, %v383, 0
      %393 = vmatprep.subr.mxu0 %v385
      %394 = vmatpush1.msra.mxu0 %v384
      %395 = vmatprep.subr.mxu0 0.0
      %396 = vmatpush1.msra.mxu0 0.0
      %397 = vmatprep.subr.mxu0 0.0
      %398 = vmatpush1.msra.mxu0 0.0
      %399 = vmatprep.subr.mxu0 0.0
      %400 = vmatpush1.msra.mxu0 0.0
      %401 = vmatprep.subr.mxu0 0.0
      %402 = vmatpush1.msra.mxu0 0.0
      %403 = vmatprep.subr.mxu0 0.0
      %404 = vmatpush1.msra.mxu0 0.0
      %405 = vmatprep.subr.mxu0 0.0
      %406 = vmatpush1.msra.mxu0 0.0
      %407 = vmatprep.subr.mxu0 0.0
      %408 = vmatpush1.msra.mxu0 0.0
      %409 = vmatprep.subr.mxu0 0.0
      %410 = vmatpush1.msra.mxu0 0.0
      %411 = vmatprep.subr.mxu0 0.0
      %412 = vmatpush1.msra.mxu0 0.0
      %413 = vmatprep.subr.mxu0 0.0
      %414 = vmatpush1.msra.mxu0 0.0
      %415 = vmatprep.subr.mxu0 0.0
      %416 = vmatpush1.msra.mxu0 0.0
      %417 = vmatprep.subr.mxu0 0.0
      %418 = vmatpush1.msra.mxu0 0.0
      %419 = vmatprep.subr.mxu0 0.0
      %420 = vmatpush1.msra.mxu0 0.0
      %421 = vmatprep.subr.mxu0 0.0
      %422 = vmatpush1.msra.mxu0 0.0
      %423 = vmatprep.subr.mxu0 0.0
      %424 = vmatpush1.msra.mxu0 0.0
      %425 = vmatprep.subr.mxu0 0.0
      %426 = vmatpush1.msra.mxu0 0.0
      %427 = vmatprep.subr.mxu0 0.0
      %428 = vmatpush1.msra.mxu0 0.0
      %429 = vmatprep.subr.mxu0 0.0
      %430 = vmatpush1.msra.mxu0 0.0
      %431 = vmatprep.subr.mxu0 0.0
      %432 = vmatpush1.msra.mxu0 0.0
      %433 = vmatprep.subr.mxu0 0.0
      %434 = vmatpush1.msra.mxu0 0.0
      %435 = vmatprep.subr.mxu0 0.0
      %436 = vmatpush1.msra.mxu0 0.0
      %437 = vmatprep.subr.mxu0 0.0
      %438 = vmatpush1.msra.mxu0 0.0
      %439 = vmatprep.subr.mxu0 0.0
      %440 = vmatpush1.msra.mxu0 0.0
      %441 = vmatprep.subr.mxu0 0.0
      %442 = vmatpush1.msra.mxu0 0.0
      %443 = vmatprep.subr.mxu0 0.0
      %444 = vmatpush1.msra.mxu0 0.0
      %445 = vmatprep.subr.mxu0 0.0
      %446 = vmatpush1.msra.mxu0 0.0
      %447 = vmatprep.subr.mxu0 0.0
      %448 = vmatpush1.msra.mxu0 0.0
      %449 = vmatprep.subr.mxu0 0.0
      %450 = vmatpush1.msra.mxu0 0.0
      %451 = vmatprep.subr.mxu0 0.0
      %452 = vmatpush1.msra.mxu0 0.0
      %453 = vmatprep.subr.mxu0 0.0
      %454 = vmatpush1.msra.mxu0 0.0
      %455 = vmatprep.subr.mxu0 0.0
      %456 = vmatpush1.msra.mxu0 0.0
      %457 = vmatprep.mubr.f32.mxu0 0.0
      %458 = vmatmul.mubr.f32.gmra.mrb[0].mxu0 %v388
      %v459 = vpop.f32.mrb[0].mxu0
      %v460 = vadd.f32 0.0, %v459
      %v461 = vpop.f32.mrb[0].mxu0
      %v462 = vadd.f32 0.0, %v461
      %463 = vmatprep.mubr.f32.mxu0 0.0
      %464 = vmatmul.mubr.f32.gmra.mrb[0].mxu0 %v391
      %v465 = vpop.f32.mrb[0].mxu0
      %v466 = vadd.f32 0.0, %v465
      %v467 = vpop.f32.mrb[0].mxu0
      %v468 = vadd.f32 0.0, %v467
      %469 = vdwg.mxu0
      %v471 = vsel %vm386, %v378, 0
      %v474 = vsel %vm386, %v379, 0
      %476 = vmatprep.subr.mxu0 %v381
      %477 = vmatpush1.msra.mxu0 %v380
      %478 = vmatprep.subr.mxu0 0.0
      %479 = vmatpush1.msra.mxu0 0.0
      %480 = vmatprep.subr.mxu0 0.0
      %481 = vmatpush1.msra.mxu0 0.0
      %482 = vmatprep.subr.mxu0 0.0
      %483 = vmatpush1.msra.mxu0 0.0
      %484 = vmatprep.subr.mxu0 0.0
      %485 = vmatpush1.msra.mxu0 0.0
      %486 = vmatprep.subr.mxu0 0.0
      %487 = vmatpush1.msra.mxu0 0.0
      %488 = vmatprep.subr.mxu0 0.0
      %489 = vmatpush1.msra.mxu0 0.0
      %490 = vmatprep.subr.mxu0 0.0
      %491 = vmatpush1.msra.mxu0 0.0
      %492 = vmatprep.subr.mxu0 0.0
      %493 = vmatpush1.msra.mxu0 0.0
      %494 = vmatprep.subr.mxu0 0.0
      %495 = vmatpush1.msra.mxu0 0.0
      %496 = vmatprep.subr.mxu0 0.0
      %497 = vmatpush1.msra.mxu0 0.0
      %498 = vmatprep.subr.mxu0 0.0
      %499 = vmatpush1.msra.mxu0 0.0
      %500 = vmatprep.subr.mxu0 0.0
      %501 = vmatpush1.msra.mxu0 0.0
      %502 = vmatprep.subr.mxu0 0.0
      %503 = vmatpush1.msra.mxu0 0.0
      %504 = vmatprep.subr.mxu0 0.0
      %505 = vmatpush1.msra.mxu0 0.0
      %506 = vmatprep.subr.mxu0 0.0
      %507 = vmatpush1.msra.mxu0 0.0
      %508 = vmatprep.subr.mxu0 0.0
      %509 = vmatpush1.msra.mxu0 0.0
      %510 = vmatprep.subr.mxu0 0.0
      %511 = vmatpush1.msra.mxu0 0.0
      %512 = vmatprep.subr.mxu0 0.0
      %513 = vmatpush1.msra.mxu0 0.0
      %514 = vmatprep.subr.mxu0 0.0
      %515 = vmatpush1.msra.mxu0 0.0
      %516 = vmatprep.subr.mxu0 0.0
      %517 = vmatpush1.msra.mxu0 0.0
      %518 = vmatprep.subr.mxu0 0.0
      %519 = vmatpush1.msra.mxu0 0.0
      %520 = vmatprep.subr.mxu0 0.0
      %521 = vmatpush1.msra.mxu0 0.0
      %522 = vmatprep.subr.mxu0 0.0
      %523 = vmatpush1.msra.mxu0 0.0
      %524 = vmatprep.subr.mxu0 0.0
      %525 = vmatpush1.msra.mxu0 0.0
      %526 = vmatprep.subr.mxu0 0.0
      %527 = vmatpush1.msra.mxu0 0.0
      %528 = vmatprep.subr.mxu0 0.0
      %529 = vmatpush1.msra.mxu0 0.0
      %530 = vmatprep.subr.mxu0 0.0
      %531 = vmatpush1.msra.mxu0 0.0
      %532 = vmatprep.subr.mxu0 0.0
      %533 = vmatpush1.msra.mxu0 0.0
      %534 = vmatprep.subr.mxu0 0.0
      %535 = vmatpush1.msra.mxu0 0.0
      %536 = vmatprep.subr.mxu0 0.0
      %537 = vmatpush1.msra.mxu0 0.0
      %538 = vmatprep.subr.mxu0 0.0
      %539 = vmatpush1.msra.mxu0 0.0
      %540 = vmatprep.mubr.f32.mxu0 0.0
      %541 = vmatmul.mubr.f32.gmra.mrb[0].mxu0 %v471
      %v542 = vpop.f32.mrb[0].mxu0
      %v543 = vadd.f32 %v460, %v542
      %v544 = vpop.f32.mrb[0].mxu0
      %v545 = vadd.f32 %v462, %v544
      %546 = vmatprep.mubr.f32.mxu0 0.0
      %547 = vmatmul.mubr.f32.gmra.mrb[0].mxu0 %v474
      %v548 = vpop.f32.mrb[0].mxu0
      %v549 = vadd.f32 %v466, %v548
      %v550 = vpop.f32.mrb[0].mxu0
      %v551 = vadd.f32 %v468, %v550
      %552 = vdwg.mxu0
      %v553 = vld [vmem:[%s4] sm:$0xff]
      %v554 = vld [vmem:[%s4 + $0x8] sm:$0xff]
      %556 = vset.pattern.permute.xlu0 0
      %557 = vperm.xlu0 %556, %v553
      %v558 = vpop.permute.xlu0 %557
      %561 = vset.pattern.permute.xlu0 0
      %562 = vperm.xlu0 %561, %v554
      %v563 = vpop.permute.xlu0 %562
      %v565 = vmul.f32 %v543, %v558
      %v566 = vmul.f32 %v545, %v558
      %v567 = vmul.f32 %v549, %v563
      %v568 = vmul.f32 %v551, %v563
      %v569 = vld [vmem:[%s5] sm:$0xff]
      %v570 = vld [vmem:[%s5 + $0x8] sm:$0xff]
      %572 = vset.pattern.permute.xlu0 0
      %573 = vperm.xlu0 %572, %v569
      %v574 = vpop.permute.xlu0 %573
      %577 = vset.pattern.permute.xlu0 0
      %578 = vperm.xlu0 %577, %v570
      %v579 = vpop.permute.xlu0 %578
      %v581 = vadd.f32 %v565, %v574
      %v582 = vadd.f32 %v566, %v574
      %v583 = vadd.f32 %v567, %v579
      %v584 = vadd.f32 %v568, %v579
      %v585 = vmax.f32 %v581, 0.0
      %v586 = vmax.f32 %v582, 0.0
      %v587 = vmax.f32 %v583, 0.0
      %v588 = vmax.f32 %v584, 0.0
      %589 = vst [vmem:[%s366] sm:$0xff] %v585
      %590 = vst [vmem:[%s366 + $0x8] sm:$0xff] %v586
      %591 = vst [vmem:[%s376] sm:$0xff] %v587
      %592 = vst [vmem:[%s376 + $0x8] sm:$0xff] %v588
      %s593 = smul.u32 2, %s24
      %p594 = scmp.lt.s32.totalorder %s23, 1
      %s595 = scalar_select %p594, %s23, 1
      %p596 = scmp.lt.s32.totalorder %s593, 1
      %s597 = scalar_select %p596, %s593, 1
      %s598 = smul.addr %s595, 2
      %s599 = sadd.s32 %s597, %s598
      %s600 = smul.addr %s599, 8
      %s601 = scalar_lea.vmem %s6, %s600
      %s602 = smul.u32 2, %s24
      %p603 = scmp.lt.s32.totalorder %s23, 1
      %s604 = scalar_select %p603, %s23, 1
      %p605 = scmp.lt.s32.totalorder %s602, 1
      %s606 = scalar_select %p605, %s602, 1
      %s607 = smul.addr %s604, 2
      %s608 = sadd.s32 %s606, %s607
      %s609 = smul.addr %s608, 8
      %s610 = scalar_lea.vmem %s7, %s609
      // Predicated region
      $region45: #{nddr_forward.3} parent=43 // pred_check
        %p611 = pneg %p191
      $region46: #{nddr_forward.3} parent=43 // pred_check_branch
        %613 = sbr.rel (%p611) target = $region48
      $region47: #{nddr_forward.3} parent=43 // pred_region
        %s614 = smul.u32 2, %s24
      $region48: #{nddr_forward.3} parent=43 // pred_fallthru
        _
      // Predicated region
      $region49: #{nddr_forward.3} parent=43 // pred_check
        %p615 = pneg %p219
      $region50: #{nddr_forward.3} parent=43 // pred_check_branch
        %617 = sbr.rel (%p615) target = $region52
      $region51: #{nddr_forward.3} parent=43 // pred_region
        %s618 = smul.u32 2, %s24
      $region52: #{nddr_forward.3} parent=43 // pred_fallthru
        _
    $region44: #{nddr_forward.3} parent=5 // pred_fallthru
      _
    %p619 = scmp.le.s32.totalorder 2, %s14
    // Predicated region
    $region53: #{nddr_forward.3} parent=5 // pred_check
      %p620 = pneg %p619
    $region54: #{nddr_forward.3} parent=5 // pred_check_branch
      %622 = sbr.rel (%p620) target = $region56
    $region55: #{nddr_forward.3} parent=5 // pred_region
      %s623 = ssub.s32 %s14, 2
      // Predicated region
      $region57: #{nddr_forward.3} parent=55 // pred_check
        %p624 = pneg %p197
      $region58: #{nddr_forward.3} parent=55 // pred_check_branch
        %626 = sbr.rel (%p624) target = $region60
      $region59: #{nddr_forward.3} parent=55 // pred_region
        %s627 = smul.u32 2, %s26
        %p628 = scmp.lt.s32.totalorder %s25, 1
        %s629 = scalar_select %p628, %s25, 1
        %p630 = scmp.lt.s32.totalorder %s627, 1
        %s631 = scalar_select %p630, %s627, 1
        %s632 = smul.addr %s629, 2
        %s633 = sadd.s32 %s631, %s632
        %s634 = smul.addr %s633, 8
        %s635 = scalar_lea.vmem %s6, %s634
      $region60: #{nddr_forward.3} parent=55 // pred_fallthru
        _
      // Predicated region
      $region61: #{nddr_forward.3} parent=55 // pred_check
        %p636 = pneg %p225
      $region62: #{nddr_forward.3} parent=55 // pred_check_branch
        %638 = sbr.rel (%p636) target = $region64
      $region63: #{nddr_forward.3} parent=55 // pred_region
        %s639 = smul.u32 2, %s26
        %p640 = scmp.lt.s32.totalorder %s25, 1
        %s641 = scalar_select %p640, %s25, 1
        %p642 = scmp.lt.s32.totalorder %s639, 1
        %s643 = scalar_select %p642, %s639, 1
        %s644 = smul.addr %s641, 2
        %s645 = sadd.s32 %s643, %s644
        %s646 = smul.addr %s645, 8
        %s647 = scalar_lea.vmem %s7, %s646
      $region64: #{nddr_forward.3} parent=55 // pred_fallthru
        _
    $region56: #{nddr_forward.3} parent=5 // pred_fallthru
      _
  $region6: #{nddr_forward.3} parent=0 // loop_footer
    %s18 = sadd.s32 1, %s14
  $region7: #{nddr_forward.3} parent=0 // loop_footer_branch
    %13 = sbr.rel target = $region3
  $region8: #{nddr_forward.3} parent=0 // loop_exit
    _

</llo_original>
